<compile_context>
chip_gen: v5e
topology: v5e:2x2
jax: 0.10.0
libtpu: 0.0.40
codegen_flags: <defaults>
</compile_context>

<pallas_src>
import functools

import jax
import jax.numpy as jnp
from jax.experimental import pallas as pl
from jax.experimental.pallas import tpu as pltpu

LANES = 512            # lane-dense width (multiple of 128); one row = 128 anchors x 4 coords
MAX_BLOCK_ROWS = 1024  # 1024 x 512 x 4 B = 2 MiB per f32 input block


def _round_up(x, m):
    return ((x + m - 1) // m) * m


def _smooth_l1_kernel(pred_ref, gt_ref, mask_ref, out_ref, *,
                      inv_sigma2, half_sigma2, half_inv_sigma2,
                      block_rows, lanes):
    # Foreground weight: precomputed per-coordinate int8 mask -> f32 (VPU convert).
    w = mask_ref[...].astype(jnp.float32)                 # (block_rows, lanes)
    d = w * (pred_ref[...] - gt_ref[...])                 # weighted diff
    ad = jnp.abs(d)
    y = jnp.where(ad < inv_sigma2, half_sigma2 * (d * d), ad - half_inv_sigma2)

    # Per-tile partial sums: reduce only along the sublane/row axis (pure VPU adds,
    # tile-aligned reshape). No cross-lane reduce, no SMEM accumulator chain.
    partial = jnp.sum(y.reshape(block_rows // 8, 8, lanes), axis=0)   # (8, lanes)
    out_ref[...] = partial[None, :, :]


def smooth_l1_loss_pallas(pred_loc, gt_loc, gt_cls, sigma=3.0):
    """pred_loc, gt_loc: (N, 4) float; gt_cls: (N,) int. Returns scalar f32 loss."""
    N, C = pred_loc.shape
    assert gt_loc.shape == (N, C)
    assert gt_cls.shape == (N,)
    assert LANES % C == 0

    anchors_per_row = LANES // C                       # 128 anchors per lane-dense row
    rows = -(-N // anchors_per_row)                    # ceil
    block_rows = min(MAX_BLOCK_ROWS, _round_up(max(rows, 1), 32))
    padded_rows = _round_up(rows, block_rows)
    n_pad = padded_rows * anchors_per_row
    grid = padded_rows // block_rows
    pad = n_pad - N

    # Lane-dense, padded views (contiguous reshapes; padded anchors contribute 0).
    pred_f = jnp.pad(pred_loc.astype(jnp.float32), ((0, pad), (0, 0))).reshape(padded_rows, LANES)
    gt_f = jnp.pad(gt_loc.astype(jnp.float32), ((0, pad), (0, 0))).reshape(padded_rows, LANES)
    # Per-coordinate foreground mask as int8 (same bytes/anchor as an int32 cls column).
    fg = (gt_cls > 0).astype(jnp.int8)
    mask = jnp.pad(jnp.repeat(fg, C), (0, pad * C)).reshape(padded_rows, LANES)

    sigma2 = float(sigma) * float(sigma)
    kernel = functools.partial(
        _smooth_l1_kernel,
        inv_sigma2=1.0 / sigma2,
        half_sigma2=0.5 * sigma2,
        half_inv_sigma2=0.5 / sigma2,
        block_rows=block_rows,
        lanes=LANES,
    )

    partials = pl.pallas_call(
        kernel,
        out_shape=jax.ShapeDtypeStruct((grid, 8, LANES), jnp.float32),
        grid_spec=pltpu.PrefetchScalarGridSpec(
            num_scalar_prefetch=0,
            grid=(grid,),
            in_specs=[
                pl.BlockSpec((block_rows, LANES), lambda i: (i, 0)),
                pl.BlockSpec((block_rows, LANES), lambda i: (i, 0)),
                pl.BlockSpec((block_rows, LANES), lambda i: (i, 0)),
            ],
            out_specs=pl.BlockSpec((1, 8, LANES), lambda i: (i, 0, 0)),
        ),
        compiler_params=pltpu.CompilerParams(
            dimension_semantics=("parallel",),        # independent tiles -> both TCs on v7x
            vmem_limit_bytes=32 * 1024 * 1024,
        ),
    )(pred_f, gt_f, mask)

    loss_sum = jnp.sum(partials)
    # Normalizer computed once in XLA on the tiny (N,) label vector; division outside
    # the kernel.  TODO(synk): the PyTorch reference also divides by zero when no
    # anchor has gt_cls >= 0; semantics kept identical here.
    count = jnp.sum((gt_cls >= 0).astype(jnp.float32))
    return loss_sum / count


def _reference(pred_loc, gt_loc, gt_cls, sigma=3.0):
    sigma2 = sigma * sigma
    weight = (gt_cls[:, None] > 0).astype(jnp.float32)
    diff = weight * (pred_loc - gt_loc)
    abs_diff = jnp.abs(diff)
    flag = (abs_diff < 1.0 / sigma2).astype(jnp.float32)
    y = flag * sigma2 / 2.0 * diff * diff + (1.0 - flag) * (abs_diff - 0.5 / sigma2)
    return jnp.sum(y) / jnp.sum((gt_cls >= 0).astype(jnp.float32))


if __name__ == "__main__":
    key = jax.random.PRNGKey(0)
    k1, k2, k3 = jax.random.split(key, 3)

    N = 300  # deliberately not tile-aligned to exercise the padding path
    pred_loc = jax.random.normal(k1, (N, 4), dtype=jnp.float32)
    gt_loc = jax.random.normal(k2, (N, 4), dtype=jnp.float32)
    # labels in {-1, 0, 1, 2}: -1 ignored, 0 background, >0 foreground
    gt_cls = jax.random.randint(k3, (N,), -1, 3, dtype=jnp.int32)

    loss = smooth_l1_loss_pallas(pred_loc, gt_loc, gt_cls)
    jax.block_until_ready(loss)

    ref = _reference(pred_loc, gt_loc, gt_cls)
    assert jnp.allclose(loss, ref, rtol=1e-5, atol=1e-5), (loss, ref)

    print("KERNEL_OK")
</pallas_src>

<mosaic_0001>
module attributes {stable_mosaic.version = 11 : i64} {
  func.func @_smooth_l1_kernel(%arg0: i32, %arg1: memref<32x512xf32, #tpu.memory_space<vmem>>, %arg2: memref<32x512xf32, #tpu.memory_space<vmem>>, %arg3: memref<32x512xi8, #tpu.memory_space<vmem>>, %arg4: memref<1x8x512xf32, #tpu.memory_space<vmem>>) attributes {dimension_semantics = [#tpu.dimension_semantics<parallel>], iteration_bounds = array<i64: 1>, scalar_prefetch = 0 : i64, scratch_operands = 0 : i64, tpu.core_type = #tpu.core_type<tc>, window_params = [{transform_indices = @transform_0, window_bounds = array<i64: 32, 512>}, {transform_indices = @transform_1, window_bounds = array<i64: 32, 512>}, {transform_indices = @transform_2, window_bounds = array<i64: 32, 512>}, {transform_indices = @transform_3, window_bounds = array<i64: 1, 8, 512>}]} {
    %c0 = arith.constant 0 : index
    %c0_0 = arith.constant 0 : index
    %0 = vector.load %arg3[%c0, %c0_0] : memref<32x512xi8, #tpu.memory_space<vmem>>, vector<32x512xi8>
    %1 = arith.sitofp %0 : vector<32x512xi8> to vector<32x512xf32>
    %c0_1 = arith.constant 0 : index
    %c0_2 = arith.constant 0 : index
    %2 = vector.load %arg1[%c0_1, %c0_2] : memref<32x512xf32, #tpu.memory_space<vmem>>, vector<32x512xf32>
    %c0_3 = arith.constant 0 : index
    %c0_4 = arith.constant 0 : index
    %3 = vector.load %arg2[%c0_3, %c0_4] : memref<32x512xf32, #tpu.memory_space<vmem>>, vector<32x512xf32>
    %4 = arith.subf %2, %3 : vector<32x512xf32>
    %5 = arith.mulf %1, %4 : vector<32x512xf32>
    %6 = math.absf %5 : vector<32x512xf32>
    %cst = arith.constant 0.111111112 : f32
    %7 = vector.broadcast %cst : f32 to vector<32x512xf32>
    %8 = arith.cmpf olt, %6, %7 : vector<32x512xf32>
    %9 = arith.mulf %5, %5 : vector<32x512xf32>
    %cst_5 = arith.constant 4.500000e+00 : f32
    %10 = vector.broadcast %cst_5 : f32 to vector<32x512xf32>
    %11 = arith.mulf %10, %9 : vector<32x512xf32>
    %cst_6 = arith.constant 0.055555556 : f32
    %12 = vector.broadcast %cst_6 : f32 to vector<32x512xf32>
    %13 = arith.subf %6, %12 : vector<32x512xf32>
    %14 = arith.select %8, %11, %13 : vector<32x512xi1>, vector<32x512xf32>
    %15 = vector.shape_cast %14 : vector<32x512xf32> to vector<4x8x512xf32>
    %cst_7 = arith.constant dense<0.000000e+00> : vector<8x512xf32>
    %16 = vector.multi_reduction <add>, %15, %cst_7 [0] : vector<4x8x512xf32> to vector<8x512xf32>
    %17 = vector.shape_cast %16 : vector<8x512xf32> to vector<1x8x512xf32>
    %c0_8 = arith.constant 0 : index
    %c0_9 = arith.constant 0 : index
    %c0_10 = arith.constant 0 : index
    %18 = vector.load %arg4[%c0_8, %c0_9, %c0_10] : memref<1x8x512xf32, #tpu.memory_space<vmem>>, vector<1x8x512xf32>
    tpu.vector_store %arg4[%c0_8, %c0_9, %c0_10], %17 {strides = array<i32>} : memref<1x8x512xf32, #tpu.memory_space<vmem>>, vector<1x8x512xf32>,
    return
  }
  func.func @transform_0(%arg0: i32) -> (i32, i32) {
    %c0_i32 = arith.constant 0 : i32
    %c0_i32_0 = arith.constant 0 : i32
    return %arg0, %c0_i32 : i32, i32
  }
  func.func @transform_1(%arg0: i32) -> (i32, i32) {
    %c0_i32 = arith.constant 0 : i32
    %c0_i32_0 = arith.constant 0 : i32
    return %arg0, %c0_i32 : i32, i32
  }
  func.func @transform_2(%arg0: i32) -> (i32, i32) {
    %c0_i32 = arith.constant 0 : i32
    %c0_i32_0 = arith.constant 0 : i32
    return %arg0, %c0_i32 : i32, i32
  }
  func.func @transform_3(%arg0: i32) -> (i32, i32, i32) {
    %c0_i32 = arith.constant 0 : i32
    %c0_i32_0 = arith.constant 0 : i32
    %c0_i32_1 = arith.constant 0 : i32
    return %arg0, %c0_i32, %c0_i32_0 : i32, i32, i32
  }
}

</mosaic_0001>

<llo_original>
// kernel: tpu_custom_call.1
$region0: #{tpu_custom_call.1}
  #allocation0 [shape = 'u32[]', space=smem, size = 0x4, offset = 0x4, fixed_abs, tag = 'smem constant byte address 0x4 - core index']
  #allocation1 [shape = 'u32[72,128]{1,0:T(1,128)}', space=vmem, size = 0x9000, scoped, tag = 'internal scratch']
  %s0 = inlined_call_operand.hbm [shape: f32[32,512], index: 0, kind: input, shape index: {}]
  %s1 = inlined_call_operand.hbm [shape: f32[32,512], index: 1, kind: input, shape index: {}]
  %s2 = inlined_call_operand.hbm [shape: s8[32,512], index: 2, kind: input, shape index: {}]
  %s3 = inlined_call_operand.hbm [shape: f32[1,8,512], index: 3, kind: output, shape index: {}]
  %s4 = sld [smem:[#allocation0]]
  $region34: #{tpu_custom_call.1} parent=0
    _
  %s6 = ssub.s32 1, %s4
  %s7 = scalar_select 0, %s6, %s4
  $region1: #{tpu_custom_call.1} parent=0
    #allocation2 [shape = 'u8[65536]{0}', space=vmem, size = 0x10000, scoped, tag = 'input window, operand 0, single buffered']
    #allocation3 [shape = 's32[1]{0}', space=sflag, size = 0x4, scoped, tag = 'scoped memory for tpu_custom_call.1']
    #allocation4 [shape = 's32[1]{0}', space=sflag, size = 0x4, scoped, tag = 'scoped memory for tpu_custom_call.1']
    #allocation5 [shape = 'u8[65536]{0}', space=vmem, size = 0x10000, scoped, tag = 'input window, operand 1, single buffered']
    #allocation6 [shape = 's32[1]{0}', space=sflag, size = 0x4, scoped, tag = 'scoped memory for tpu_custom_call.1']
    #allocation7 [shape = 'u8[16384]{0}', space=vmem, size = 0x4000, scoped, tag = 'input window, operand 2, single buffered']
    #allocation8 [shape = 'u8[16384]{0}', space=vmem, size = 0x4000, scoped, tag = 'output window, operand 0, single buffered']
    %8 = vsyncpa [#allocation3], 0
    %9 = vsyncpa [#allocation6], 0
    %10 = vsyncpa [#allocation4], 0
    // Predicated region
    $region2: #{tpu_custom_call.1} parent=1 // pred_check
      _
    $region3: #{tpu_custom_call.1} parent=1 // pred_check_branch
      %12 = sbr.rel (0) target = $region5
    $region4: #{tpu_custom_call.1} parent=1 // pred_region
      %14 = vsyncadd [#allocation3], 0
      %s15 = sshll.u32 %s0, 4
      %s16 = int_to_ptr.hbm [resolvable:$true] %s15
      %s17 = sshll.u32 [#allocation2], 4
      %s18 = int_to_ptr.vmem [resolvable:$true] %s17
      %23 = dma.hbm_to_vmem [thread:$0]  %s16, 2048, %s18, [#allocation3], 512, 512, 32
    $region5: #{tpu_custom_call.1} parent=1 // pred_fallthru
      _
    // Predicated region
    $region6: #{tpu_custom_call.1} parent=1 // pred_check
      _
    $region7: #{tpu_custom_call.1} parent=1 // pred_check_branch
      %25 = sbr.rel (0) target = $region9
    $region8: #{tpu_custom_call.1} parent=1 // pred_region
      %27 = vsyncadd [#allocation6], 0
      %s28 = sshll.u32 %s1, 4
      %s29 = int_to_ptr.hbm [resolvable:$true] %s28
      %s30 = sshll.u32 [#allocation5], 4
      %s31 = int_to_ptr.vmem [resolvable:$true] %s30
      %36 = dma.hbm_to_vmem [thread:$0]  %s29, 2048, %s31, [#allocation6], 512, 512, 32
    $region9: #{tpu_custom_call.1} parent=1 // pred_fallthru
      _
    // Predicated region
    $region10: #{tpu_custom_call.1} parent=1 // pred_check
      _
    $region11: #{tpu_custom_call.1} parent=1 // pred_check_branch
      %38 = sbr.rel (0) target = $region13
    $region12: #{tpu_custom_call.1} parent=1 // pred_region
      %40 = vsyncadd [#allocation6], 0
      %s42 = sshll.u32 %s2, 4
      %s43 = int_to_ptr.hbm [resolvable:$true] %s42
      %s44 = sshll.u32 [#allocation7], 4
      %s45 = int_to_ptr.vmem [resolvable:$true] %s44
      %47 = dma.hbm_to_vmem [thread:$0]  %s43, 512, %s45, [#allocation6]
    $region13: #{tpu_custom_call.1} parent=1 // pred_fallthru
      _
    // Predicated region
    $region14: #{tpu_custom_call.1} parent=1 // pred_check
      _
    $region15: #{tpu_custom_call.1} parent=1 // pred_check_branch
      %49 = sbr.rel (0) target = $region17
    $region16: #{tpu_custom_call.1} parent=1 // pred_region
      %51 = dma.done [#allocation3], 2048
    $region17: #{tpu_custom_call.1} parent=1 // pred_fallthru
      _
    // Predicated region
    $region18: #{tpu_custom_call.1} parent=1 // pred_check
      _
    $region19: #{tpu_custom_call.1} parent=1 // pred_check_branch
      %53 = sbr.rel (0) target = $region21
    $region20: #{tpu_custom_call.1} parent=1 // pred_region
      %55 = dma.done [#allocation6], 2048
    $region21: #{tpu_custom_call.1} parent=1 // pred_fallthru
      _
    // Predicated region
    $region22: #{tpu_custom_call.1} parent=1 // pred_check
      _
    $region23: #{tpu_custom_call.1} parent=1 // pred_check_branch
      %57 = sbr.rel (0) target = $region25
    $region24: #{tpu_custom_call.1} parent=1 // pred_region
      %59 = dma.done [#allocation6], 512
    $region25: #{tpu_custom_call.1} parent=1 // pred_fallthru
      _
    %v60 = vld [vmem:[#allocation7] sm:$0xff]
    %v61 = vld [vmem:[#allocation7 + $0x8] sm:$0xff]
    %v62 = vld [vmem:[#allocation7 + $0x10] sm:$0xff]
    %v63 = vld [vmem:[#allocation7 + $0x18] sm:$0xff]
    %v64 = vunpack.c.0.s8 %v60
    %v65 = vunpack.c.0.s8 %v61
    %v66 = vunpack.c.0.s8 %v62
    %v67 = vunpack.c.0.s8 %v63
    %v68 = vunpack.c.1.s8 %v60
    %v69 = vunpack.c.1.s8 %v61
    %v70 = vunpack.c.1.s8 %v62
    %v71 = vunpack.c.1.s8 %v63
    %v72 = vunpack.c.2.s8 %v60
    %v73 = vunpack.c.2.s8 %v61
    %v74 = vunpack.c.2.s8 %v62
    %v75 = vunpack.c.2.s8 %v63
    %v76 = vunpack.c.3.s8 %v60
    %v77 = vunpack.c.3.s8 %v61
    %v78 = vunpack.c.3.s8 %v62
    %v79 = vunpack.c.3.s8 %v63
    %v80 = vcvt.s32.f32 %v64
    %v81 = vcvt.s32.f32 %v65
    %v82 = vcvt.s32.f32 %v66
    %v83 = vcvt.s32.f32 %v67
    %v84 = vcvt.s32.f32 %v68
    %v85 = vcvt.s32.f32 %v69
    %v86 = vcvt.s32.f32 %v70
    %v87 = vcvt.s32.f32 %v71
    %v88 = vcvt.s32.f32 %v72
    %v89 = vcvt.s32.f32 %v73
    %v90 = vcvt.s32.f32 %v74
    %v91 = vcvt.s32.f32 %v75
    %v92 = vcvt.s32.f32 %v76
    %v93 = vcvt.s32.f32 %v77
    %v94 = vcvt.s32.f32 %v78
    %v95 = vcvt.s32.f32 %v79
    %v96 = vld [vmem:[#allocation2] sm:$0xff]
    %v97 = vld [vmem:[#allocation2 + $0x8] sm:$0xff]
    %v98 = vld [vmem:[#allocation2 + $0x10] sm:$0xff]
    %v99 = vld [vmem:[#allocation2 + $0x18] sm:$0xff]
    %v100 = vld [vmem:[#allocation2 + $0x20] sm:$0xff]
    %v101 = vld [vmem:[#allocation2 + $0x28] sm:$0xff]
    %v102 = vld [vmem:[#allocation2 + $0x30] sm:$0xff]
    %v103 = vld [vmem:[#allocation2 + $0x38] sm:$0xff]
    %v104 = vld [vmem:[#allocation2 + $0x40] sm:$0xff]
    %v105 = vld [vmem:[#allocation2 + $0x48] sm:$0xff]
    %v106 = vld [vmem:[#allocation2 + $0x50] sm:$0xff]
    %v107 = vld [vmem:[#allocation2 + $0x58] sm:$0xff]
    %v108 = vld [vmem:[#allocation2 + $0x60] sm:$0xff]
    %v109 = vld [vmem:[#allocation2 + $0x68] sm:$0xff]
    %v110 = vld [vmem:[#allocation2 + $0x70] sm:$0xff]
    %v111 = vld [vmem:[#allocation2 + $0x78] sm:$0xff]
    %v112 = vld [vmem:[#allocation5] sm:$0xff]
    %v113 = vld [vmem:[#allocation5 + $0x8] sm:$0xff]
    %v114 = vld [vmem:[#allocation5 + $0x10] sm:$0xff]
    %v115 = vld [vmem:[#allocation5 + $0x18] sm:$0xff]
    %v116 = vld [vmem:[#allocation5 + $0x20] sm:$0xff]
    %v117 = vld [vmem:[#allocation5 + $0x28] sm:$0xff]
    %v118 = vld [vmem:[#allocation5 + $0x30] sm:$0xff]
    %v119 = vld [vmem:[#allocation5 + $0x38] sm:$0xff]
    %v120 = vld [vmem:[#allocation5 + $0x40] sm:$0xff]
    %v121 = vld [vmem:[#allocation5 + $0x48] sm:$0xff]
    %v122 = vld [vmem:[#allocation5 + $0x50] sm:$0xff]
    %v123 = vld [vmem:[#allocation5 + $0x58] sm:$0xff]
    %v124 = vld [vmem:[#allocation5 + $0x60] sm:$0xff]
    %v125 = vld [vmem:[#allocation5 + $0x68] sm:$0xff]
    %v126 = vld [vmem:[#allocation5 + $0x70] sm:$0xff]
    %v127 = vld [vmem:[#allocation5 + $0x78] sm:$0xff]
    %v128 = vsub.f32 %v96, %v112
    %v129 = vsub.f32 %v97, %v113
    %v130 = vsub.f32 %v98, %v114
    %v131 = vsub.f32 %v99, %v115
    %v132 = vsub.f32 %v100, %v116
    %v133 = vsub.f32 %v101, %v117
    %v134 = vsub.f32 %v102, %v118
    %v135 = vsub.f32 %v103, %v119
    %v136 = vsub.f32 %v104, %v120
    %v137 = vsub.f32 %v105, %v121
    %v138 = vsub.f32 %v106, %v122
    %v139 = vsub.f32 %v107, %v123
    %v140 = vsub.f32 %v108, %v124
    %v141 = vsub.f32 %v109, %v125
    %v142 = vsub.f32 %v110, %v126
    %v143 = vsub.f32 %v111, %v127
    %v144 = vmul.f32 %v80, %v128
    %v145 = vmul.f32 %v81, %v129
    %v146 = vmul.f32 %v82, %v130
    %v147 = vmul.f32 %v83, %v131
    %v148 = vmul.f32 %v84, %v132
    %v149 = vmul.f32 %v85, %v133
    %v150 = vmul.f32 %v86, %v134
    %v151 = vmul.f32 %v87, %v135
    %v152 = vmul.f32 %v88, %v136
    %v153 = vmul.f32 %v89, %v137
    %v154 = vmul.f32 %v90, %v138
    %v155 = vmul.f32 %v91, %v139
    %v156 = vmul.f32 %v92, %v140
    %v157 = vmul.f32 %v93, %v141
    %v158 = vmul.f32 %v94, %v142
    %v159 = vmul.f32 %v95, %v143
    %v160 = vand.u32 2147483647, %v144
    %v161 = vand.u32 2147483647, %v145
    %v162 = vand.u32 2147483647, %v146
    %v163 = vand.u32 2147483647, %v147
    %v164 = vand.u32 2147483647, %v148
    %v165 = vand.u32 2147483647, %v149
    %v166 = vand.u32 2147483647, %v150
    %v167 = vand.u32 2147483647, %v151
    %v168 = vand.u32 2147483647, %v152
    %v169 = vand.u32 2147483647, %v153
    %v170 = vand.u32 2147483647, %v154
    %v171 = vand.u32 2147483647, %v155
    %v172 = vand.u32 2147483647, %v156
    %v173 = vand.u32 2147483647, %v157
    %v174 = vand.u32 2147483647, %v158
    %v175 = vand.u32 2147483647, %v159
    %vm176 = vcmp.lt.f32.partialorder %v160, 0.11111111
    %vm177 = vcmp.lt.f32.partialorder %v161, 0.11111111
    %vm178 = vcmp.lt.f32.partialorder %v162, 0.11111111
    %vm179 = vcmp.lt.f32.partialorder %v163, 0.11111111
    %vm180 = vcmp.lt.f32.partialorder %v164, 0.11111111
    %vm181 = vcmp.lt.f32.partialorder %v165, 0.11111111
    %vm182 = vcmp.lt.f32.partialorder %v166, 0.11111111
    %vm183 = vcmp.lt.f32.partialorder %v167, 0.11111111
    %vm184 = vcmp.lt.f32.partialorder %v168, 0.11111111
    %vm185 = vcmp.lt.f32.partialorder %v169, 0.11111111
    %vm186 = vcmp.lt.f32.partialorder %v170, 0.11111111
    %vm187 = vcmp.lt.f32.partialorder %v171, 0.11111111
    %vm188 = vcmp.lt.f32.partialorder %v172, 0.11111111
    %vm189 = vcmp.lt.f32.partialorder %v173, 0.11111111
    %vm190 = vcmp.lt.f32.partialorder %v174, 0.11111111
    %vm191 = vcmp.lt.f32.partialorder %v175, 0.11111111
    %v192 = vmul.f32 %v144, %v144
    %v193 = vmul.f32 %v145, %v145
    %v194 = vmul.f32 %v146, %v146
    %v195 = vmul.f32 %v147, %v147
    %v196 = vmul.f32 %v148, %v148
    %v197 = vmul.f32 %v149, %v149
    %v198 = vmul.f32 %v150, %v150
    %v199 = vmul.f32 %v151, %v151
    %v200 = vmul.f32 %v152, %v152
    %v201 = vmul.f32 %v153, %v153
    %v202 = vmul.f32 %v154, %v154
    %v203 = vmul.f32 %v155, %v155
    %v204 = vmul.f32 %v156, %v156
    %v205 = vmul.f32 %v157, %v157
    %v206 = vmul.f32 %v158, %v158
    %v207 = vmul.f32 %v159, %v159
    %v208 = vmul.f32 %v192, 4.5
    %v209 = vmul.f32 %v193, 4.5
    %v210 = vmul.f32 %v194, 4.5
    %v211 = vmul.f32 %v195, 4.5
    %v212 = vmul.f32 %v196, 4.5
    %v213 = vmul.f32 %v197, 4.5
    %v214 = vmul.f32 %v198, 4.5
    %v215 = vmul.f32 %v199, 4.5
    %v216 = vmul.f32 %v200, 4.5
    %v217 = vmul.f32 %v201, 4.5
    %v218 = vmul.f32 %v202, 4.5
    %v219 = vmul.f32 %v203, 4.5
    %v220 = vmul.f32 %v204, 4.5
    %v221 = vmul.f32 %v205, 4.5
    %v222 = vmul.f32 %v206, 4.5
    %v223 = vmul.f32 %v207, 4.5
    %v224 = vsub.f32 %v160, 0.055555556
    %v225 = vsub.f32 %v161, 0.055555556
    %v226 = vsub.f32 %v162, 0.055555556
    %v227 = vsub.f32 %v163, 0.055555556
    %v228 = vsub.f32 %v164, 0.055555556
    %v229 = vsub.f32 %v165, 0.055555556
    %v230 = vsub.f32 %v166, 0.055555556
    %v231 = vsub.f32 %v167, 0.055555556
    %v232 = vsub.f32 %v168, 0.055555556
    %v233 = vsub.f32 %v169, 0.055555556
    %v234 = vsub.f32 %v170, 0.055555556
    %v235 = vsub.f32 %v171, 0.055555556
    %v236 = vsub.f32 %v172, 0.055555556
    %v237 = vsub.f32 %v173, 0.055555556
    %v238 = vsub.f32 %v174, 0.055555556
    %v239 = vsub.f32 %v175, 0.055555556
    %v240 = vsel %vm176, %v208, %v224
    %v241 = vsel %vm177, %v209, %v225
    %v242 = vsel %vm178, %v210, %v226
    %v243 = vsel %vm179, %v211, %v227
    %v244 = vsel %vm180, %v212, %v228
    %v245 = vsel %vm181, %v213, %v229
    %v246 = vsel %vm182, %v214, %v230
    %v247 = vsel %vm183, %v215, %v231
    %v248 = vsel %vm184, %v216, %v232
    %v249 = vsel %vm185, %v217, %v233
    %v250 = vsel %vm186, %v218, %v234
    %v251 = vsel %vm187, %v219, %v235
    %v252 = vsel %vm188, %v220, %v236
    %v253 = vsel %vm189, %v221, %v237
    %v254 = vsel %vm190, %v222, %v238
    %v255 = vsel %vm191, %v223, %v239
    %v256 = vadd.f32 %v240, %v244
    %v257 = vadd.f32 %v256, %v248
    %v258 = vadd.f32 %v257, %v252
    %v259 = vadd.f32 %v241, %v245
    %v260 = vadd.f32 %v259, %v249
    %v261 = vadd.f32 %v260, %v253
    %v262 = vadd.f32 %v242, %v246
    %v263 = vadd.f32 %v262, %v250
    %v264 = vadd.f32 %v263, %v254
    %v265 = vadd.f32 %v243, %v247
    %v266 = vadd.f32 %v265, %v251
    %v267 = vadd.f32 %v266, %v255
    %268 = vst [vmem:[#allocation8] sm:$0xff] %v258
    %269 = vst [vmem:[#allocation8 + $0x8] sm:$0xff] %v261
    %270 = vst [vmem:[#allocation8 + $0x10] sm:$0xff] %v264
    %271 = vst [vmem:[#allocation8 + $0x18] sm:$0xff] %v267
    // Predicated region
    $region26: #{tpu_custom_call.1} parent=1 // pred_check
      _
    $region27: #{tpu_custom_call.1} parent=1 // pred_check_branch
      %273 = sbr.rel (0) target = $region29
    $region28: #{tpu_custom_call.1} parent=1 // pred_region
      %275 = vsyncadd [#allocation4], 0
      %s277 = sshll.u32 [#allocation8], 4
      %s278 = int_to_ptr.vmem [resolvable:$true] %s277
      %s279 = sshll.u32 %s3, 4
      %s280 = int_to_ptr.hbm [resolvable:$true] %s279
      %282 = dma.vmem_to_hbm [thread:$0]  %s278, 512, %s280, [#allocation4]
    $region29: #{tpu_custom_call.1} parent=1 // pred_fallthru
      _
    // Predicated region
    $region30: #{tpu_custom_call.1} parent=1 // pred_check
      _
    $region31: #{tpu_custom_call.1} parent=1 // pred_check_branch
      %284 = sbr.rel (0) target = $region33
    $region32: #{tpu_custom_call.1} parent=1 // pred_region
      %286 = dma.done [#allocation4], 512
    $region33: #{tpu_custom_call.1} parent=1 // pred_fallthru
      _
    %287 = vsyncpa [#allocation3], 1
    %288 = vsyncpa [#allocation6], 1
    %289 = vsyncpa [#allocation4], 1

</llo_original>
